<compile_context>
chip_gen: v7x
topology: tpu7x:2x2x1
jax: 0.10.0
libtpu: 0.0.40
codegen_flags: <defaults>
</compile_context>

<pallas_src>
import math
import functools

import jax
import jax.numpy as jnp
from jax.experimental import pallas as pl
from jax.experimental.pallas import tpu as pltpu


# ---------------------------------------------------------------------------
# Parameter / buffer construction (glue, plain JAX) -- mirrors __init__
# ---------------------------------------------------------------------------
def make_pe_table(d_model: int, max_len: int = 300) -> jnp.ndarray:
    """Builds the (max_len, 1, d_model) sinusoidal table exactly as the module."""
    position = jnp.arange(max_len, dtype=jnp.float32)[:, None]          # (L, 1)
    div_term = jnp.exp(
        jnp.arange(0, d_model, 2, dtype=jnp.float32)
        * (-math.log(10000.0) / d_model)
    )                                                                    # (D/2,)
    pe = jnp.zeros((max_len, 1, d_model), dtype=jnp.float32)
    pe = pe.at[:, 0, 0::2].set(jnp.sin(position * div_term))
    pe = pe.at[:, 0, 1::2].set(jnp.cos(position * div_term))
    return pe


# ---------------------------------------------------------------------------
# Tiling helper: pick a row-tile so one block is ~2 MiB (pipelined, fits the
# scoped VMEM of every generation even with double buffering: 3 arrays x 2
# buffers x 2 MiB = 12 MiB).
# ---------------------------------------------------------------------------
def _choose_tile_rows(n_rows: int, row_bytes: int,
                      target_bytes: int = 2 * 1024 * 1024) -> int:
    ts = max(1, target_bytes // max(row_bytes, 1))
    if ts >= n_rows:
        return int(n_rows)
    ts = max(8, (ts // 8) * 8)          # keep sublane dim a multiple of 8
    return int(min(ts, n_rows))


# ---------------------------------------------------------------------------
# Pallas kernels (operate on lane-dense 2D (rows, B*D) blocks)
# ---------------------------------------------------------------------------
def _pe_add_kernel(x_ref, pe_ref, o_ref):
    # Eval-mode forward: dropout is identity.
    o_ref[...] = x_ref[...] + pe_ref[...]


def _hash_u32(x):
    # lowbias32-style integer finalizer: cheap, well-mixed 32-bit hash (VPU only).
    x = x ^ (x >> 16)
    x = x * jnp.uint32(0x7FEB352D)
    x = x ^ (x >> 15)
    x = x * jnp.uint32(0x846CA68B)
    x = x ^ (x >> 16)
    return x


def _pe_add_dropout_kernel(seed_ref, x_ref, pe_ref, o_ref, *, p: float):
    # Training-mode inverted dropout after the positional add.
    # Stateless counter-based RNG: hash(seed, global element index) -> uint32
    # bits, compared against an integer threshold (no float convert needed).
    # TODO(synk): mask cannot bit-match torch's RNG stream; inverted-dropout
    # semantics and keep-probability match exactly.
    ts, bd = x_ref.shape
    y = x_ref[...] + pe_ref[...]

    rows = jax.lax.broadcasted_iota(jnp.int32, (ts, bd), 0).astype(jnp.uint32)
    cols = jax.lax.broadcasted_iota(jnp.int32, (ts, bd), 1).astype(jnp.uint32)
    base = (pl.program_id(0) * ts).astype(jnp.uint32)        # block row offset
    flat = (base + rows) * jnp.uint32(bd) + cols              # global flat index

    seed_u = seed_ref[0].astype(jnp.uint32)
    bits = _hash_u32(flat + (seed_u + jnp.uint32(1)) * jnp.uint32(0x9E3779B9))

    thr = jnp.uint32(min(max(int(round(p * 4294967296.0)), 0), 4294967295))
    keep = bits >= thr                                        # P(keep) = 1 - p
    scale = 1.0 / (1.0 - p)
    o_ref[...] = jnp.where(keep, y * scale, 0.0).astype(o_ref.dtype)


# ---------------------------------------------------------------------------
# Wrapper
# ---------------------------------------------------------------------------
@functools.partial(jax.jit, static_argnames=("training", "p"))
def positional_encoding(x, pe, seed=0, *, training: bool = False, p: float = 0.1):
    """x: (S, B, D); pe: (max_len, 1, D).  Returns dropout(x + pe[:S])."""
    S, B, D = x.shape
    BD = B * D

    # Lane-dense presentation: last dim (B*D) maps onto the 128-lane axis.
    x2 = x.reshape(S, BD)
    pe_row = pe[:S, 0, :].astype(x.dtype)        # (S, D) static slice
    pe2 = jnp.tile(pe_row, (1, B))               # (S, B*D), matches x2 row layout

    itemsize = jnp.dtype(x.dtype).itemsize
    ts = _choose_tile_rows(S, BD * itemsize)
    grid = (pl.cdiv(S, ts),)

    cparams = pltpu.CompilerParams(
        dimension_semantics=("parallel",),       # lets v7x shard across its 2 TCs
        vmem_limit_bytes=32 * 1024 * 1024,
    )
    out_shape = jax.ShapeDtypeStruct((S, BD), x.dtype)
    blk = pl.BlockSpec((ts, BD), lambda i: (i, 0))

    if (not training) or p <= 0.0:
        out2 = pl.pallas_call(
            _pe_add_kernel,
            out_shape=out_shape,
            grid_spec=pltpu.PrefetchScalarGridSpec(
                num_scalar_prefetch=0,
                grid=grid,
                in_specs=[blk, blk],
                out_specs=blk,
            ),
            compiler_params=cparams,
        )(x2, pe2)
        return out2.reshape(S, B, D)

    blk_p = pl.BlockSpec((ts, BD), lambda i, seed_ref: (i, 0))
    seed_arr = jnp.asarray([seed], dtype=jnp.int32)
    out2 = pl.pallas_call(
        functools.partial(_pe_add_dropout_kernel, p=float(p)),
        out_shape=out_shape,
        grid_spec=pltpu.PrefetchScalarGridSpec(
            num_scalar_prefetch=1,
            grid=grid,
            in_specs=[blk_p, blk_p],
            out_specs=blk_p,
        ),
        compiler_params=cparams,
    )(seed_arr, x2, pe2)
    return out2.reshape(S, B, D)


# ---------------------------------------------------------------------------
# Main
# ---------------------------------------------------------------------------
if __name__ == "__main__":
    d_model = 32
    max_len = 300
    seq_len = 8
    batch = 2

    pe = make_pe_table(d_model, max_len)

    key = jax.random.PRNGKey(0)
    x = jax.random.normal(key, (seq_len, batch, d_model), dtype=jnp.float32)

    # Eval-mode forward (dropout = identity), matches PyTorch module.eval()
    out = jax.block_until_ready(positional_encoding(x, pe, training=False))
    ref = x + pe[:seq_len]
    assert out.shape == (seq_len, batch, d_model)
    assert jnp.allclose(out, ref, atol=1e-6, rtol=1e-6)

    # Training-mode (stochastic inverted dropout) kernel: every element must be
    # either exactly zero (dropped) or ref / (1 - p) (kept & rescaled).
    p = 0.1
    out_train = jax.block_until_ready(
        positional_encoding(x, pe, seed=123, training=True, p=p)
    )
    assert out_train.shape == (seq_len, batch, d_model)
    scaled = ref / (1.0 - p)
    ok = jnp.isclose(out_train, scaled, atol=1e-5, rtol=1e-5) | (out_train == 0.0)
    assert bool(jnp.all(ok))

    print("KERNEL_OK")
</pallas_src>

<mosaic_0001>
module attributes {stable_mosaic.version = 11 : i64} {
  func.func @_pe_add_kernel(%arg0: i32, %arg1: memref<8x64xf32, #tpu.memory_space<vmem>>, %arg2: memref<8x64xf32, #tpu.memory_space<vmem>>, %arg3: memref<8x64xf32, #tpu.memory_space<vmem>>) attributes {dimension_semantics = [#tpu.dimension_semantics<parallel>], iteration_bounds = array<i64: 1>, scalar_prefetch = 0 : i64, scratch_operands = 0 : i64, tpu.core_type = #tpu.core_type<tc>, window_params = [{transform_indices = @transform_0, window_bounds = array<i64: 8, 64>}, {transform_indices = @transform_1, window_bounds = array<i64: 8, 64>}, {transform_indices = @transform_2, window_bounds = array<i64: 8, 64>}]} {
    %c0 = arith.constant 0 : index
    %c0_0 = arith.constant 0 : index
    %0 = vector.load %arg1[%c0, %c0_0] : memref<8x64xf32, #tpu.memory_space<vmem>>, vector<8x64xf32>
    %c0_1 = arith.constant 0 : index
    %c0_2 = arith.constant 0 : index
    %1 = vector.load %arg2[%c0_1, %c0_2] : memref<8x64xf32, #tpu.memory_space<vmem>>, vector<8x64xf32>
    %2 = arith.addf %0, %1 : vector<8x64xf32>
    %c0_3 = arith.constant 0 : index
    %c0_4 = arith.constant 0 : index
    %3 = vector.load %arg3[%c0_3, %c0_4] : memref<8x64xf32, #tpu.memory_space<vmem>>, vector<8x64xf32>
    tpu.vector_store %arg3[%c0_3, %c0_4], %2 {strides = array<i32>} : memref<8x64xf32, #tpu.memory_space<vmem>>, vector<8x64xf32>,
    return
  }
  func.func @transform_0(%arg0: i32) -> (i32, i32) {
    %c0_i32 = arith.constant 0 : i32
    %c0_i32_0 = arith.constant 0 : i32
    return %arg0, %c0_i32 : i32, i32
  }
  func.func @transform_1(%arg0: i32) -> (i32, i32) {
    %c0_i32 = arith.constant 0 : i32
    %c0_i32_0 = arith.constant 0 : i32
    return %arg0, %c0_i32 : i32, i32
  }
  func.func @transform_2(%arg0: i32) -> (i32, i32) {
    %c0_i32 = arith.constant 0 : i32
    %c0_i32_0 = arith.constant 0 : i32
    return %arg0, %c0_i32 : i32, i32
  }
}

</mosaic_0001>

<llo_original>
// kernel: tile.7
$region0: #{tile.7}
  %s0 = inlined_call_operand.vmem [shape: f32[8,2,32], index: 0, kind: input, shape index: {}]
  %s1 = inlined_call_operand.vmem [shape: f32[8,64], index: 1, kind: output, shape index: {}]
  $region1: #{tile.7} parent=0
    #allocation0 [shape = 'u8[32768]{0}', space=vmem, size = 0x8000, scoped, tag = 'scoped mem for input reshape']
    %s3 = sshllo.u32 0, 2
    %s4 = smul.addr 2, 7
    %s5 = scalar_lea.vmem %s0, %s4
    %v6 = vld [vmem:[%s5] sm:%s3]
    %s7 = scalar_lea.vmem [#allocation0], 56
    %8 = vst [vmem:[%s7] sm:%s3] %v6
    %s9 = smul.addr 2, 6
    %s10 = scalar_lea.vmem %s0, %s9
    %v11 = vld [vmem:[%s10] sm:%s3]
    %s12 = scalar_lea.vmem [#allocation0], 48
    %13 = vst [vmem:[%s12] sm:%s3] %v11
    %s14 = smul.addr 2, 5
    %s15 = scalar_lea.vmem %s0, %s14
    %v16 = vld [vmem:[%s15] sm:%s3]
    %s17 = scalar_lea.vmem [#allocation0], 40
    %18 = vst [vmem:[%s17] sm:%s3] %v16
    %s19 = smul.addr 2, 4
    %s20 = scalar_lea.vmem %s0, %s19
    %v21 = vld [vmem:[%s20] sm:%s3]
    %s22 = scalar_lea.vmem [#allocation0], 32
    %23 = vst [vmem:[%s22] sm:%s3] %v21
    %s24 = smul.addr 2, 3
    %s25 = scalar_lea.vmem %s0, %s24
    %v26 = vld [vmem:[%s25] sm:%s3]
    %s27 = scalar_lea.vmem [#allocation0], 24
    %28 = vst [vmem:[%s27] sm:%s3] %v26
    %s29 = smul.addr 2, 2
    %s30 = scalar_lea.vmem %s0, %s29
    %v31 = vld [vmem:[%s30] sm:%s3]
    %s32 = scalar_lea.vmem [#allocation0], 16
    %33 = vst [vmem:[%s32] sm:%s3] %v31
    %s34 = scalar_lea.vmem %s0, 2
    %v35 = vld [vmem:[%s34] sm:%s3]
    %s36 = scalar_lea.vmem [#allocation0], 8
    %37 = vst [vmem:[%s36] sm:%s3] %v35
    %v38 = vld [vmem:[%s0] sm:%s3]
    %39 = vst [vmem:[#allocation0] sm:%s3] %v38
    %v40 = vld [vmem:[#allocation0] ss:$8 sm:$0xf]
    %v41 = vld [vmem:[#allocation0] ss:$8 sm:$0xf0]
    %vm42 = vcmask 1047556
    %v43 = vsel %vm42, %v41, %v40
    %vm44 = vcmask 261120
    %45 = vst.msk [vmem:[%s1] sm:$0xff] %vm44, %v43
    %s46 = scalar_lea.vmem [#allocation0], 1
    %v47 = vld [vmem:[%s46] ss:$8 sm:$0xf]
    %s48 = scalar_lea.vmem [#allocation0], 1
    %v49 = vld [vmem:[%s48] ss:$8 sm:$0xf0]
    %vm50 = vcmask 1047556
    %v51 = vsel %vm50, %v49, %v47
    %52 = vrot.lane.b32.xlu0 %v51, 32
    %v53 = vpop.permute.xlu0 %52
    %vm54 = vcmask 523520
    %55 = vst.msk [vmem:[%s1] sm:$0xff] %vm54, %v53

// kernel: positional_encoding.1
$region0: #{positional_encoding.1}
  #allocation0 [shape = 'u32[]', space=smem, size = 0x4, offset = 0x4, fixed_abs, tag = 'smem constant byte address 0x4 - core index']
  #allocation1 [shape = 'u32[144,128]{1,0:T(1,128)}', space=vmem, size = 0x12000, scoped, tag = 'internal scratch']
  %s0 = inlined_call_operand.vmem [shape: f32[8,64], index: 0, kind: input, shape index: {}]
  %s1 = inlined_call_operand.vmem [shape: f32[8,64], index: 1, kind: input, shape index: {}]
  %s2 = inlined_call_operand.vmem [shape: f32[8,64], index: 2, kind: output, shape index: {}]
  %s3 = sld [smem:[#allocation0]]
  $region18: #{positional_encoding.1} parent=0
    _
  %s5 = ssub.s32 1, %s3
  %s6 = scalar_select 0, %s5, %s3
  // Predicated region
  $region2: #{positional_encoding.1} parent=0 // pred_check
    _
  $region3: #{positional_encoding.1} parent=0 // pred_check_branch
    %8 = sbr.rel (0) target = $region5
  $region4: #{positional_encoding.1} parent=0 // pred_region
    _
  $region5: #{positional_encoding.1} parent=0 // pred_fallthru
    _
  // Predicated region
  $region6: #{positional_encoding.1} parent=0 // pred_check
    _
  $region7: #{positional_encoding.1} parent=0 // pred_check_branch
    %10 = sbr.rel (0) target = $region9
  $region8: #{positional_encoding.1} parent=0 // pred_region
    _
  $region9: #{positional_encoding.1} parent=0 // pred_fallthru
    _
  %v11 = vld [vmem:[%s0] sm:$0xff]
  %v12 = vld [vmem:[%s1] sm:$0xff]
  %v13 = vadd.f32 %v11, %v12
  %vm14 = vcmask 523264
  %15 = vst.msk [vmem:[%s2] sm:$0xff] %vm14, %v13
  // Predicated region
  $region10: #{positional_encoding.1} parent=0 // pred_check
    _
  $region11: #{positional_encoding.1} parent=0 // pred_check_branch
    %17 = sbr.rel (0) target = $region13
  $region12: #{positional_encoding.1} parent=0 // pred_region
    _
  $region13: #{positional_encoding.1} parent=0 // pred_fallthru
    _
  // Predicated region
  $region14: #{positional_encoding.1} parent=0 // pred_check
    _
  $region15: #{positional_encoding.1} parent=0 // pred_check_branch
    %19 = sbr.rel (0) target = $region17
  $region16: #{positional_encoding.1} parent=0 // pred_region
    _
  $region17: #{positional_encoding.1} parent=0 // pred_fallthru
    _

</llo_original>
